<compile_context>
chip_gen: v7x
topology: tpu7x:2x2x1
jax: 0.10.0
libtpu: 0.0.40
codegen_flags: <defaults>
</compile_context>

<pallas_src>
import functools

import jax
import jax.numpy as jnp
from jax.experimental import pallas as pl
from jax.experimental.pallas import tpu as pltpu


# ---------------------------------------------------------------------------
# Kernels
# ---------------------------------------------------------------------------


def _proj_kernel(x_ref, w_ref, b_ref, q_ref, kT_ref, v_ref, *, kp):
    """Fused q/k/v projection for one (batch, row-tile)."""
    x = x_ref[0]                                                    # (tn, D)
    proj = jnp.dot(x, w_ref[...],
                   preferred_element_type=jnp.float32) + b_ref[...]
    q_ref[0] = proj[:, :kp].astype(q_ref.dtype)                     # (tn, kp)
    # Store the key pre-transposed: one XLU transpose per row tile here buys a
    # plain (tq, kp) x (kp, N) MXU feed in the attention kernel.
    kT_ref[0] = proj[:, kp:2 * kp].T.astype(kT_ref.dtype)           # (kp, tn)
    v_ref[0] = proj[:, 2 * kp:].astype(v_ref.dtype)                 # (tn, D)


def _attn_kernel(q_ref, kT_ref, v_ref, out_ref, attn_ref=None, *,
                 exp_dtype, approx_recip):
    """softmax(q @ k^T) @ v for one (batch, query-tile)."""
    q = q_ref[0]                                                    # (tq, kp)
    energy = jnp.dot(q, kT_ref[0],
                     preferred_element_type=jnp.float32)            # (tq, N)

    # Softmax over the key axis: row max / sum / reciprocal in f32, exp
    # optionally in bf16 (v6e/v7x EUP) on the fast path.
    m = jnp.max(energy, axis=-1, keepdims=True)
    e = jnp.exp((energy - m).astype(exp_dtype))
    e32 = e.astype(jnp.float32)
    denom = jnp.sum(e32, axis=-1, keepdims=True)
    attn = e32 * pl.reciprocal(denom, approx=approx_recip)          # (tq, N)

    out = jnp.dot(attn.astype(v_ref.dtype), v_ref[0],
                  preferred_element_type=jnp.float32)               # (tq, D)

    # TODO(synk): when D is not a multiple of 128 this store is a masked
    # (non lane-dense) vst; repack the output for real deployments.
    out_ref[0] = out.astype(out_ref.dtype)
    if attn_ref is not None:
        attn_ref[0] = attn.astype(attn_ref.dtype)


# ---------------------------------------------------------------------------
# Tiling / hardware helpers
# ---------------------------------------------------------------------------


def _vmem_capacity_bytes():
    try:
        return int(pltpu.get_tpu_info().vmem_capacity_bytes)
    except Exception:
        return 64 * 1024 * 1024        # conservative default (v7x per-core)


def _default_exp_dtype(compute_dtype):
    if jnp.dtype(compute_dtype) == jnp.dtype(jnp.float32):
        return jnp.float32
    try:
        kind = jax.devices()[0].device_kind.lower()
    except Exception:
        kind = ""
    # bf16 EUP exists only on v6e/v7x; v5e and older keep the exp in f32.
    if "v6" in kind or "v7" in kind:
        return compute_dtype
    return jnp.float32


def _largest_divisor_tile(n, cap, align=8):
    """Largest divisor of n that is <= cap, preferring multiples of `align`."""
    cap = max(int(cap), 1)
    if n <= cap:
        return n
    fallback = 1
    for t in range(cap, 0, -1):
        if n % t == 0:
            if t % align == 0:
                return t
            fallback = max(fallback, t)
    return fallback


def _fit_tile(n, fixed_bytes, per_row_bytes, budget_bytes, max_tile, align=8):
    """Largest tile (a divisor of n) whose VMEM footprint fits the budget."""
    avail = max(budget_bytes - fixed_bytes, 0)
    cap = min(max_tile, max(avail // max(per_row_bytes, 1), align))
    return _largest_divisor_tile(n, cap, align)


# ---------------------------------------------------------------------------
# Wrapper
# ---------------------------------------------------------------------------


def factorized_synthesizer_random(x, wq, bq, wk, bk, wv, bv, *,
                                  compute_dtype=jnp.bfloat16,
                                  attn_dtype=None,
                                  return_attention=True,
                                  exp_dtype=None,
                                  max_q_tile=512,
                                  max_proj_tile=512):
    """x: (B, N, D); wq/wk: (k, D); wv: (D, D); 1-D biases (PyTorch layout).

    Returns (out, attention) like the PyTorch module.  With
    return_attention=False the (B, N, N) writeback is skipped and attention is
    returned as None.
    """
    B, N, D = x.shape
    k = wq.shape[0]
    kp = max(128, ((k + 127) // 128) * 128)        # lane-pad q/k width to 128
    f32 = jnp.float32
    cs = jnp.dtype(compute_dtype).itemsize
    exact = jnp.dtype(compute_dtype) == jnp.dtype(f32)
    if attn_dtype is None:
        attn_dtype = f32 if exact else jnp.bfloat16
    if exp_dtype is None:
        exp_dtype = _default_exp_dtype(compute_dtype)
    out_dtype = x.dtype
    approx = not exact
    wdim = 2 * kp + D

    # ---- fused, lane-padded weights (PyTorch (out, in) -> (in, out)) -------
    # Zero-padding of the q/k columns and biases is exact: padded columns are
    # identically 0, so they do not contribute to the energy contraction.
    wq_t = jnp.pad(wq.T.astype(f32), ((0, 0), (0, kp - k)))
    wk_t = jnp.pad(wk.T.astype(f32), ((0, 0), (0, kp - k)))
    w_all = jnp.concatenate([wq_t, wk_t, wv.T.astype(f32)],
                            axis=1).astype(compute_dtype)            # (D, wdim)
    b_all = jnp.concatenate([jnp.pad(bq.astype(f32), (0, kp - k)),
                             jnp.pad(bk.astype(f32), (0, kp - k)),
                             bv.astype(f32)]).reshape(1, wdim)
    xc = x.astype(compute_dtype)

    # ---- generation-aware tile sizes + explicit VMEM limit ------------------
    vmem_cap = _vmem_capacity_bytes()
    budget = int(0.7 * vmem_cap)
    attn_bytes = jnp.dtype(attn_dtype).itemsize if return_attention else 0
    out_bytes = jnp.dtype(out_dtype).itemsize

    # Attention kernel: kT/v blocks are full-N and double-buffered (fixed
    # cost); q/out/attn blocks scale with the query tile.
    fixed_attn = 2 * kp * N * cs + 2 * N * D * cs
    per_row_attn = 2 * kp * cs + 2 * D * out_bytes + 2 * N * attn_bytes
    tq = _fit_tile(N, fixed_attn, per_row_attn, budget, max_q_tile)

    # Projection kernel: W/bias single-buffered (fixed); x/q/kT/v scale with tn.
    fixed_proj = D * wdim * cs + wdim * 4
    per_row_proj = 2 * D * cs + 2 * kp * cs + 2 * kp * cs + 2 * D * cs
    tn = _fit_tile(N, fixed_proj, per_row_proj, budget, max_proj_tile)

    assert N % tq == 0 and N % tn == 0
    vmem_limit = int(min(vmem_cap,
                         max(32 * 1024 * 1024, budget + 16 * 1024 * 1024)))

    # ---- 1) fused projection ------------------------------------------------
    proj_cost = pl.CostEstimate(
        flops=int(2 * B * N * D * wdim),
        transcendentals=0,
        bytes_accessed=int(B * N * D * cs + D * wdim * cs + wdim * 4
                           + 2 * B * N * kp * cs + B * N * D * cs))

    q_all, kT_all, v_all = pl.pallas_call(
        functools.partial(_proj_kernel, kp=kp),
        out_shape=(
            jax.ShapeDtypeStruct((B, N, kp), compute_dtype),
            jax.ShapeDtypeStruct((B, kp, N), compute_dtype),   # pre-transposed
            jax.ShapeDtypeStruct((B, N, D), compute_dtype),
        ),
        grid_spec=pltpu.PrefetchScalarGridSpec(
            num_scalar_prefetch=0,
            grid=(B, N // tn),
            in_specs=[
                pl.BlockSpec((1, tn, D), lambda b, n: (b, n, 0)),
                # Constant-index operands: single-buffer to save VMEM.
                pl.BlockSpec((D, wdim), lambda b, n: (0, 0),
                             pipeline_mode=pl.Buffered(1)),
                pl.BlockSpec((1, wdim), lambda b, n: (0, 0),
                             pipeline_mode=pl.Buffered(1)),
            ],
            out_specs=(
                pl.BlockSpec((1, tn, kp), lambda b, n: (b, n, 0)),
                pl.BlockSpec((1, kp, tn), lambda b, n: (b, 0, n)),
                pl.BlockSpec((1, tn, D), lambda b, n: (b, n, 0)),
            ),
        ),
        compiler_params=pltpu.CompilerParams(
            dimension_semantics=("parallel", "parallel"),
            vmem_limit_bytes=vmem_limit),
        cost_estimate=proj_cost,
    )(xc, w_all, b_all)

    # ---- 2) attention -------------------------------------------------------
    attn_cost = pl.CostEstimate(
        flops=int(2 * B * N * N * (kp + D)),
        transcendentals=int(B * N * N),
        bytes_accessed=int(B * N * kp * cs + B * kp * N * cs + B * N * D * cs
                           + B * N * D * out_bytes + B * N * N * attn_bytes))

    out_shapes = [jax.ShapeDtypeStruct((B, N, D), out_dtype)]
    out_specs = [pl.BlockSpec((1, tq, D), lambda b, q: (b, q, 0))]
    if return_attention:
        out_shapes.append(jax.ShapeDtypeStruct((B, N, N), attn_dtype))
        out_specs.append(pl.BlockSpec((1, tq, N), lambda b, q: (b, q, 0)))

    results = pl.pallas_call(
        functools.partial(_attn_kernel, exp_dtype=exp_dtype,
                          approx_recip=approx),
        out_shape=tuple(out_shapes),
        grid_spec=pltpu.PrefetchScalarGridSpec(
            num_scalar_prefetch=0,
            grid=(B, N // tq),
            in_specs=[
                pl.BlockSpec((1, tq, kp), lambda b, q: (b, q, 0)),
                pl.BlockSpec((1, kp, N), lambda b, q: (b, 0, 0)),
                pl.BlockSpec((1, N, D), lambda b, q: (b, 0, 0)),
            ],
            out_specs=tuple(out_specs),
        ),
        # No carried scratch -> both axes "parallel" (megacore can shard query
        # tiles even when B == 1, e.g. on v7x's two TensorCores).
        compiler_params=pltpu.CompilerParams(
            dimension_semantics=("parallel", "parallel"),
            vmem_limit_bytes=vmem_limit),
        cost_estimate=attn_cost,
    )(q_all, kT_all, v_all)

    if return_attention:
        out, attn = results
        return out, attn
    out = results[0] if isinstance(results, (tuple, list)) else results
    return out, None


# ---------------------------------------------------------------------------
# Reference + test
# ---------------------------------------------------------------------------


def _reference(x, wq, bq, wk, bk, wv, bv):
    q = jnp.einsum('bnd,kd->bnk', x, wq) + bq
    key = jnp.einsum('bnd,kd->bnk', x, wk) + bk
    energy = jnp.einsum('bnk,bmk->bnm', q, key)
    attn = jax.nn.softmax(energy, axis=-1)
    v = jnp.einsum('bnd,ed->bne', x, wv) + bv
    out = jnp.einsum('bnm,bmd->bnd', attn, v)
    return out, attn


if __name__ == "__main__":
    B, N, D, K = 2, 8, 32, 8

    key0 = jax.random.PRNGKey(0)
    ks = jax.random.split(key0, 7)
    x = jax.random.normal(ks[0], (B, N, D), dtype=jnp.float32)
    # Deterministic synthetic parameters (PyTorch Linear layout: (out, in)).
    wq = 0.1 * jax.random.normal(ks[1], (K, D), dtype=jnp.float32)
    bq = 0.1 * jax.random.normal(ks[2], (K,), dtype=jnp.float32)
    wk = 0.1 * jax.random.normal(ks[3], (K, D), dtype=jnp.float32)
    bk = 0.1 * jax.random.normal(ks[4], (K,), dtype=jnp.float32)
    wv = 0.1 * jax.random.normal(ks[5], (D, D), dtype=jnp.float32)
    bv = 0.1 * jax.random.normal(ks[6], (D,), dtype=jnp.float32)

    ref_out, ref_attn = _reference(x, wq, bq, wk, bk, wv, bv)

    # Exact path (f32 MXU operands, f32 exp, exact reciprocal): tight tol.
    out, attn = factorized_synthesizer_random(
        x, wq, bq, wk, bk, wv, bv, compute_dtype=jnp.float32)
    out, attn = jax.block_until_ready((out, attn))
    assert out.shape == (B, N, D) and attn.shape == (B, N, N)
    assert jnp.allclose(out, ref_out, atol=1e-5, rtol=1e-5)
    assert jnp.allclose(attn, ref_attn, atol=1e-5, rtol=1e-5)

    # Fast path (bf16 MXU operands, f32 softmax stats, bf16 attn writeback).
    out_bf, attn_bf = factorized_synthesizer_random(
        x, wq, bq, wk, bk, wv, bv, compute_dtype=jnp.bfloat16)
    out_bf, attn_bf = jax.block_until_ready((out_bf, attn_bf))
    assert attn_bf.dtype == jnp.bfloat16
    assert jnp.allclose(out_bf, ref_out, atol=5e-2, rtol=5e-2)
    assert jnp.allclose(attn_bf.astype(jnp.float32), ref_attn,
                        atol=5e-2, rtol=5e-2)

    # Output-only path (skips the (B, N, N) attention HBM writeback entirely).
    out_only, attn_none = factorized_synthesizer_random(
        x, wq, bq, wk, bk, wv, bv, compute_dtype=jnp.bfloat16,
        return_attention=False)
    out_only = jax.block_until_ready(out_only)
    assert attn_none is None
    assert jnp.allclose(out_only, ref_out, atol=5e-2, rtol=5e-2)

    print("KERNEL_OK")
</pallas_src>

<mosaic_0001>
module attributes {stable_mosaic.version = 11 : i64} {
  func.func @_proj_kernel(%arg0: i32, %arg1: i32, %arg2: memref<1x8x32xf32, #tpu.memory_space<vmem>>, %arg3: memref<32x288xf32, #tpu.memory_space<vmem>>, %arg4: memref<1x288xf32, #tpu.memory_space<vmem>>, %arg5: memref<1x8x128xf32, #tpu.memory_space<vmem>>, %arg6: memref<1x128x8xf32, #tpu.memory_space<vmem>>, %arg7: memref<1x8x32xf32, #tpu.memory_space<vmem>>) attributes {dimension_semantics = [#tpu.dimension_semantics<parallel>, #tpu.dimension_semantics<parallel>], iteration_bounds = array<i64: 2, 1>, scalar_prefetch = 0 : i64, scratch_operands = 0 : i64, tpu.core_type = #tpu.core_type<tc>, window_params = [{transform_indices = @transform_0, window_bounds = array<i64: 1, 8, 32>}, {pipeline_mode = #tpu.pipeline_mode<synchronous>, transform_indices = @transform_1, window_bounds = array<i64: 32, 288>}, {pipeline_mode = #tpu.pipeline_mode<synchronous>, transform_indices = @transform_2, window_bounds = array<i64: 1, 288>}, {transform_indices = @transform_3, window_bounds = array<i64: 1, 8, 128>}, {transform_indices = @transform_4, window_bounds = array<i64: 1, 128, 8>}, {transform_indices = @transform_5, window_bounds = array<i64: 1, 8, 32>}]} {
    %c0 = arith.constant 0 : index
    %c0_0 = arith.constant 0 : index
    %c0_1 = arith.constant 0 : index
    %0 = vector.load %arg2[%c0, %c0_0, %c0_1] : memref<1x8x32xf32, #tpu.memory_space<vmem>>, vector<1x8x32xf32>
    %1 = vector.shape_cast %0 : vector<1x8x32xf32> to vector<8x32xf32>
    %c0_2 = arith.constant 0 : index
    %c0_3 = arith.constant 0 : index
    %2 = vector.load %arg3[%c0_2, %c0_3] : memref<32x288xf32, #tpu.memory_space<vmem>>, vector<32x288xf32>
    %cst = arith.constant dense<0.000000e+00> : vector<8x288xf32>
    %3 = tpu.matmul %1, %2, %cst {dimension_numbers = #tpu.dot_dimension_numbers<[1], [0], [0], [1], [0, 0, 1, 1], [], []>} : vector<8x32xf32>, vector<32x288xf32>, vector<8x288xf32> -> vector<8x288xf32>
    %c0_4 = arith.constant 0 : index
    %c0_5 = arith.constant 0 : index
    %4 = vector.load %arg4[%c0_4, %c0_5] : memref<1x288xf32, #tpu.memory_space<vmem>>, vector<1x288xf32>
    %5 = vector.broadcast %4 : vector<1x288xf32> to vector<8x288xf32>
    %6 = arith.addf %3, %5 : vector<8x288xf32>
    %7 = vector.extract_strided_slice %6 {offsets = [0, 0], sizes = [8, 128], strides = [1, 1]} : vector<8x288xf32> to vector<8x128xf32>
    %c0_6 = arith.constant 0 : index
    %c0_7 = arith.constant 0 : index
    %c0_8 = arith.constant 0 : index
    %8 = vector.load %arg5[%c0_6, %c0_7, %c0_8] : memref<1x8x128xf32, #tpu.memory_space<vmem>>, vector<1x8x128xf32>
    %9 = vector.shape_cast %8 : vector<1x8x128xf32> to vector<8x128xf32>
    %10 = vector.shape_cast %7 : vector<8x128xf32> to vector<1x8x128xf32>
    tpu.vector_store %arg5[%c0_6, %c0_7, %c0_8], %10 {strides = array<i32>} : memref<1x8x128xf32, #tpu.memory_space<vmem>>, vector<1x8x128xf32>,
    %11 = vector.extract_strided_slice %6 {offsets = [0, 128], sizes = [8, 128], strides = [1, 1]} : vector<8x288xf32> to vector<8x128xf32>
    %12 = tpu.transpose %11, [1, 0] : vector<8x128xf32> -> vector<128x8xf32>
    %c0_9 = arith.constant 0 : index
    %c0_10 = arith.constant 0 : index
    %c0_11 = arith.constant 0 : index
    %13 = vector.load %arg6[%c0_9, %c0_10, %c0_11] : memref<1x128x8xf32, #tpu.memory_space<vmem>>, vector<1x128x8xf32>
    %14 = vector.shape_cast %13 : vector<1x128x8xf32> to vector<128x8xf32>
    %15 = vector.shape_cast %12 : vector<128x8xf32> to vector<1x128x8xf32>
    tpu.vector_store %arg6[%c0_9, %c0_10, %c0_11], %15 {strides = array<i32>} : memref<1x128x8xf32, #tpu.memory_space<vmem>>, vector<1x128x8xf32>,
    %16 = vector.extract_strided_slice %6 {offsets = [0, 256], sizes = [8, 32], strides = [1, 1]} : vector<8x288xf32> to vector<8x32xf32>
    %c0_12 = arith.constant 0 : index
    %c0_13 = arith.constant 0 : index
    %c0_14 = arith.constant 0 : index
    %17 = vector.load %arg7[%c0_12, %c0_13, %c0_14] : memref<1x8x32xf32, #tpu.memory_space<vmem>>, vector<1x8x32xf32>
    %18 = vector.shape_cast %17 : vector<1x8x32xf32> to vector<8x32xf32>
    %19 = vector.shape_cast %16 : vector<8x32xf32> to vector<1x8x32xf32>
    tpu.vector_store %arg7[%c0_12, %c0_13, %c0_14], %19 {strides = array<i32>} : memref<1x8x32xf32, #tpu.memory_space<vmem>>, vector<1x8x32xf32>,
    return
  }
  func.func @transform_0(%arg0: i32, %arg1: i32) -> (i32, i32, i32) {
    %c0_i32 = arith.constant 0 : i32
    %c0_i32_0 = arith.constant 0 : i32
    return %arg0, %arg1, %c0_i32 : i32, i32, i32
  }
  func.func @transform_1(%arg0: i32, %arg1: i32) -> (i32, i32) {
    %c0_i32 = arith.constant 0 : i32
    %c0_i32_0 = arith.constant 0 : i32
    %c0_i32_1 = arith.constant 0 : i32
    return %c0_i32, %c0_i32_0 : i32, i32
  }
  func.func @transform_2(%arg0: i32, %arg1: i32) -> (i32, i32) {
    %c0_i32 = arith.constant 0 : i32
    %c0_i32_0 = arith.constant 0 : i32
    %c0_i32_1 = arith.constant 0 : i32
    return %c0_i32, %c0_i32_0 : i32, i32
  }
  func.func @transform_3(%arg0: i32, %arg1: i32) -> (i32, i32, i32) {
    %c0_i32 = arith.constant 0 : i32
    %c0_i32_0 = arith.constant 0 : i32
    return %arg0, %arg1, %c0_i32 : i32, i32, i32
  }
  func.func @transform_4(%arg0: i32, %arg1: i32) -> (i32, i32, i32) {
    %c0_i32 = arith.constant 0 : i32
    %c0_i32_0 = arith.constant 0 : i32
    return %arg0, %c0_i32, %arg1 : i32, i32, i32
  }
  func.func @transform_5(%arg0: i32, %arg1: i32) -> (i32, i32, i32) {
    %c0_i32 = arith.constant 0 : i32
    %c0_i32_0 = arith.constant 0 : i32
    return %arg0, %arg1, %c0_i32 : i32, i32, i32
  }
}

</mosaic_0001>

<llo_original>
// kernel: tpu_custom_call.1
$region0: #{tpu_custom_call.1}
  #allocation0 [shape = 'u32[]', space=smem, size = 0x4, offset = 0x4, fixed_abs, tag = 'smem constant byte address 0x4 - core index']
  #allocation1 [shape = 'u32[144,128]{1,0:T(1,128)}', space=vmem, size = 0x12000, scoped, tag = 'internal scratch']
  %s0 = inlined_call_operand.hbm [shape: f32[2,8,32], index: 0, kind: input, shape index: {}]
  %s1 = inlined_call_operand.hbm [shape: f32[32,288], index: 1, kind: input, shape index: {}]
  %s2 = inlined_call_operand.vmem [shape: f32[1,288], index: 2, kind: input, shape index: {}]
  %s3 = inlined_call_operand.hbm [shape: f32[2,8,128], index: 3, kind: output, shape index: {0}]
  %s4 = inlined_call_operand.vmem [shape: f32[2,128,8], index: 4, kind: output, shape index: {1}]
  %s5 = inlined_call_operand.hbm [shape: f32[2,8,32], index: 5, kind: output, shape index: {2}]
  %6 = xla_tuple %s3, %s4, %s5
  %s7 = sld [smem:[#allocation0]]
  $region69: #{tpu_custom_call.1} parent=0
    _
  %s9 = ssub.s32 1, %s7
  %s10 = scalar_select 0, %s9, %s7
  $region1: #{tpu_custom_call.1} parent=0
    #allocation2 [shape = 'u8[8192]{0}', space=vmem, size = 0x2000, scoped, tag = 'input window, operand 0']
    #allocation3 [shape = 's32[2]{0}', space=sflag, size = 0x8, scoped, tag = 'scoped memory for tpu_custom_call.1']
    #allocation4 [shape = 's32[2]{0}', space=sflag, size = 0x8, scoped, tag = 'scoped memory for tpu_custom_call.1']
    #allocation5 [shape = 'u8[49152]{0}', space=vmem, size = 0xc000, scoped, tag = 'input window, operand 1, single buffered']
    #allocation6 [shape = 's32[1]{0}', space=sflag, size = 0x4, scoped, tag = 'scoped memory for tpu_custom_call.1']
    #allocation7 [shape = 'u8[8192]{0}', space=vmem, size = 0x2000, scoped, tag = 'output window, operand 0']
    #allocation8 [shape = 'u8[8192]{0}', space=vmem, size = 0x2000, scoped, tag = 'output window, operand 2']
    #allocation9 [shape = 's32[2]{0}', space=sflag, size = 0x8, scoped, tag = 'scoped memory for tpu_custom_call.1']
    %11 = vsyncpa [#allocation3], 0
    %s12 = scalar_lea.sflag [#allocation3], 1
    %13 = vsyncpa %s12, 0
    %14 = vsyncpa [#allocation6], 0
    %15 = vsyncpa [#allocation4], 0
    %s16 = scalar_lea.sflag [#allocation4], 1
    %17 = vsyncpa %s16, 0
    %18 = vsyncpa [#allocation9], 0
    %s19 = scalar_lea.sflag [#allocation9], 1
    %20 = vsyncpa %s19, 0
    loop: start=0, step=1, limit=4
    $region2: #{tpu_custom_call.1} parent=1 // loop_pre_header
      _
    $region3: #{tpu_custom_call.1} parent=1 // loop_header
      %s22 = sphi 0, %s26
      %p23 = scmp.ge.s32.totalorder %s22, 4
      %s29 = sphi 0, %s41
      %s30 = sphi 0, %s37
      %s31 = sphi 0, %s29
      %s32 = sphi 0, %s30
      %s33 = sphi 0, %s31
      %s34 = sphi 0, %s32
      %s46 = sphi 0, %s48
      %s49 = sphi 0, %s46
      %s50 = sphi 0, %s49
      %s66 = sphi 0, %s50
      %s70 = sphi 0, %s70
      %s72 = sphi 0, %s70
      %s73 = sphi 0, %s72
      %s87 = sphi 0, %s73
      %s91 = sphi 0, %s91
      %s93 = sphi 0, %s91
      %s94 = sphi 0, %s93
      %s108 = sphi 0, %s94
      %s116 = sphi 0, %s118
      %s119 = sphi 0, %s116
      %s120 = sphi 0, %s119
      %s136 = sphi 0, %s120
      %s144 = sphi 0, %s146
      %s147 = sphi 0, %s144
      %s148 = sphi 0, %s147
      %s164 = sphi 0, %s148
      %s172 = sphi 0, %s174
      %s175 = sphi 0, %s172
      %s176 = sphi 0, %s175
      %s192 = sphi 0, %s176
    $region4: #{tpu_custom_call.1} parent=1 // loop_header_branch
      %25 = sbr.rel (%p23) target = $region8
    $region5: #{tpu_custom_call.1} parent=1 // loop_body
      %s27 = ssub.s32 %s22, 1
      %s28 = ssub.s32 %s22, 2
      %s35 = sadd.s32 1, %s30
      %p36 = scmp.ge.s32.totalorder %s35, 1
      %s37 = scalar_select %p36, 0, %s35
      %s38 = sadd.s32 1, %s29
      %s39 = scalar_select %p36, %s38, %s29
      %p40 = scmp.ge.s32.totalorder %s39, 2
      %s41 = scalar_select %p40, 0, %s39
      %s42 = ssub.s32 %s29, %s41
      %s43 = ssub.s32 %s30, %s37
      %s44 = sor.u32 %s42, %s43
      %p45 = scmp.eq.s32.totalorder %s44, 0
      %s47 = sadd.s32 %s46, 1
      %s48 = scalar_select %p45, %s46, %s47
      %p51 = pneg %p45
      %p52 = scmp.eq.s32.totalorder %s22, 1
      %p53 = por %p51, %p52
      %p54 = scmp.ne.s32.totalorder %s46, %s49
      %p55 = scmp.eq.s32.totalorder %s22, 0
      %p56 = por %p54, %p55
      %p57 = scmp.ne.s32.totalorder %s46, %s49
      %p58 = scmp.eq.s32.totalorder %s27, 1
      %p59 = por %p57, %p58
      %p60 = scmp.ne.s32.totalorder %s49, %s50
      %p61 = scmp.eq.s32.totalorder %s27, 0
      %p62 = por %p60, %p61
      %p63 = scmp.ne.s32.totalorder %s49, %s50
      %p64 = scmp.eq.s32.totalorder %s28, 1
      %p65 = por %p63, %p64
      %p67 = scmp.ne.s32.totalorder %s50, %s66
      %p68 = scmp.eq.s32.totalorder %s28, 0
      %p69 = por %p67, %p68
      %s71 = sadd.s32 %s70, 1
      %p74 = scmp.eq.s32.totalorder %s22, 1
      %p75 = scmp.ne.s32.totalorder %s70, %s72
      %p76 = scmp.eq.s32.totalorder %s22, 0
      %p77 = por %p75, %p76
      %p78 = scmp.ne.s32.totalorder %s70, %s72
      %p79 = scmp.eq.s32.totalorder %s27, 1
      %p80 = por %p78, %p79
      %p81 = scmp.ne.s32.totalorder %s72, %s73
      %p82 = scmp.eq.s32.totalorder %s27, 0
      %p83 = por %p81, %p82
      %p84 = scmp.ne.s32.totalorder %s72, %s73
      %p85 = scmp.eq.s32.totalorder %s28, 1
      %p86 = por %p84, %p85
      %p88 = scmp.ne.s32.totalorder %s73, %s87
      %p89 = scmp.eq.s32.totalorder %s28, 0
      %p90 = por %p88, %p89
      %s92 = sadd.s32 %s91, 1
      %p95 = scmp.eq.s32.totalorder %s22, 1
      %p96 = scmp.ne.s32.totalorder %s91, %s93
      %p97 = scmp.eq.s32.totalorder %s22, 0
      %p98 = por %p96, %p97
      %p99 = scmp.ne.s32.totalorder %s91, %s93
      %p100 = scmp.eq.s32.totalorder %s27, 1
      %p101 = por %p99, %p100
      %p102 = scmp.ne.s32.totalorder %s93, %s94
      %p103 = scmp.eq.s32.totalorder %s27, 0
      %p104 = por %p102, %p103
      %p105 = scmp.ne.s32.totalorder %s93, %s94
      %p106 = scmp.eq.s32.totalorder %s28, 1
      %p107 = por %p105, %p106
      %p109 = scmp.ne.s32.totalorder %s94, %s108
      %p110 = scmp.eq.s32.totalorder %s28, 0
      %p111 = por %p109, %p110
      %s112 = ssub.s32 %s29, %s41
      %s113 = ssub.s32 %s30, %s37
      %s114 = sor.u32 %s112, %s113
      %p115 = scmp.eq.s32.totalorder %s114, 0
      %s117 = sadd.s32 %s116, 1
      %s118 = scalar_select %p115, %s116, %s117
      %p121 = pneg %p115
      %p122 = scmp.eq.s32.totalorder %s22, 1
      %p123 = por %p121, %p122
      %p124 = scmp.ne.s32.totalorder %s116, %s119
      %p125 = scmp.eq.s32.totalorder %s22, 0
      %p126 = por %p124, %p125
      %p127 = scmp.ne.s32.totalorder %s116, %s119
      %p128 = scmp.eq.s32.totalorder %s27, 1
      %p129 = por %p127, %p128
      %p130 = scmp.ne.s32.totalorder %s119, %s120
      %p131 = scmp.eq.s32.totalorder %s27, 0
      %p132 = por %p130, %p131
      %p133 = scmp.ne.s32.totalorder %s119, %s120
      %p134 = scmp.eq.s32.totalorder %s28, 1
      %p135 = por %p133, %p134
      %p137 = scmp.ne.s32.totalorder %s120, %s136
      %p138 = scmp.eq.s32.totalorder %s28, 0
      %p139 = por %p137, %p138
      %s140 = ssub.s32 %s29, %s41
      %s141 = ssub.s32 %s30, %s37
      %s142 = sor.u32 %s140, %s141
      %p143 = scmp.eq.s32.totalorder %s142, 0
      %s145 = sadd.s32 %s144, 1
      %s146 = scalar_select %p143, %s144, %s145
      %p149 = pneg %p143
      %p150 = scmp.eq.s32.totalorder %s22, 1
      %p151 = por %p149, %p150
      %p152 = scmp.ne.s32.totalorder %s144, %s147
      %p153 = scmp.eq.s32.totalorder %s22, 0
      %p154 = por %p152, %p153
      %p155 = scmp.ne.s32.totalorder %s144, %s147
      %p156 = scmp.eq.s32.totalorder %s27, 1
      %p157 = por %p155, %p156
      %p158 = scmp.ne.s32.totalorder %s147, %s148
      %p159 = scmp.eq.s32.totalorder %s27, 0
      %p160 = por %p158, %p159
      %p161 = scmp.ne.s32.totalorder %s147, %s148
      %p162 = scmp.eq.s32.totalorder %s28, 1
      %p163 = por %p161, %p162
      %p165 = scmp.ne.s32.totalorder %s148, %s164
      %p166 = scmp.eq.s32.totalorder %s28, 0
      %p167 = por %p165, %p166
      %s168 = ssub.s32 %s29, %s41
      %s169 = ssub.s32 %s30, %s37
      %s170 = sor.u32 %s168, %s169
      %p171 = scmp.eq.s32.totalorder %s170, 0
      %s173 = sadd.s32 %s172, 1
      %s174 = scalar_select %p171, %s172, %s173
      %p177 = pneg %p171
      %p178 = scmp.eq.s32.totalorder %s22, 1
      %p179 = por %p177, %p178
      %p180 = scmp.ne.s32.totalorder %s172, %s175
      %p181 = scmp.eq.s32.totalorder %s22, 0
      %p182 = por %p180, %p181
      %p183 = scmp.ne.s32.totalorder %s172, %s175
      %p184 = scmp.eq.s32.totalorder %s27, 1
      %p185 = por %p183, %p184
      %p186 = scmp.ne.s32.totalorder %s175, %s176
      %p187 = scmp.eq.s32.totalorder %s27, 0
      %p188 = por %p186, %p187
      %p189 = scmp.ne.s32.totalorder %s175, %s176
      %p190 = scmp.eq.s32.totalorder %s28, 1
      %p191 = por %p189, %p190
      %p193 = scmp.ne.s32.totalorder %s176, %s192
      %p194 = scmp.eq.s32.totalorder %s28, 0
      %p195 = por %p193, %p194
      %p196 = scmp.le.s32.totalorder 1, %s22
      %p197 = scmp.lt.s32.totalorder %s22, 3
      %p198 = pnand %p196, %p197
      %p199 = pneg %p198
      // Predicated region
      $region9: #{tpu_custom_call.1} parent=5 // pred_check
        _
      $region10: #{tpu_custom_call.1} parent=5 // pred_check_branch
        %201 = sbr.rel (%p198) target = $region12
      $region11: #{tpu_custom_call.1} parent=5 // pred_region
        %s202 = ssub.s32 %s22, 1
        // Predicated region
        $region13: #{tpu_custom_call.1} parent=11 // pred_check
          %p203 = pneg %p83
        $region14: #{tpu_custom_call.1} parent=11 // pred_check_branch
          %205 = sbr.rel (%p203) target = $region16
        $region15: #{tpu_custom_call.1} parent=11 // pred_region
          %s207 = ssub.s32 1536, 1536
          %208 = vsyncadd [#allocation6], %s207
          %s209 = sshll.u32 [#allocation5], 4
          %s210 = int_to_ptr.vmem [resolvable:$true] %s209
          %215 = dma.hbm_to_vmem [thread:$0]  %s1, 1536, %s210, [#allocation6], 384, 384, 24
        $region16: #{tpu_custom_call.1} parent=11 // pred_fallthru
          _
        // Predicated region
        $region17: #{tpu_custom_call.1} parent=11 // pred_check
          %p216 = pneg %p104
        $region18: #{tpu_custom_call.1} parent=11 // pred_check_branch
          %218 = sbr.rel (%p216) target = $region20
        $region19: #{tpu_custom_call.1} parent=11 // pred_region
          _
        $region20: #{tpu_custom_call.1} parent=11 // pred_fallthru
          _
      $region12: #{tpu_custom_call.1} parent=5 // pred_fallthru
        _
      %p219 = scmp.lt.s32.totalorder %s22, 2
      // Predicated region
      $region21: #{tpu_custom_call.1} parent=5 // pred_check
        %p220 = pneg %p219
      $region22: #{tpu_custom_call.1} parent=5 // pred_check_branch
        %222 = sbr.rel (%p220) target = $region24
      $region23: #{tpu_custom_call.1} parent=5 // pred_region
        // Predicated region
        $region25: #{tpu_custom_call.1} parent=23 // pred_check
          %p223 = pneg %p56
        $region26: #{tpu_custom_call.1} parent=23 // pred_check_branch
          %225 = sbr.rel (%p223) target = $region28
        $region27: #{tpu_custom_call.1} parent=23 // pred_region
          %s226 = sand.u32 %s46, 1
          %s227 = scalar_lea.sflag [#allocation3], %s226
          %s228 = sand.u32 %s46, 1
          %s229 = smul.addr %s228, 8
          %s230 = scalar_lea.vmem [#allocation2], %s229
          %s232 = ssub.s32 128, 128
          %233 = vsyncadd %s227, %s232
          %s234 = sadd.s32 %s30, %s29
          %s235 = smul.addr %s234, 128
          %s236 = scalar_lea.hbm %s0, %s235
          %s238 = sshll.u32 %s230, 4
          %s239 = int_to_ptr.vmem [resolvable:$true] %s238
          %241 = dma.hbm_to_vmem [thread:$0]  %s236, 128, %s239, %s227
        $region28: #{tpu_custom_call.1} parent=23 // pred_fallthru
          _
      $region24: #{tpu_custom_call.1} parent=5 // pred_fallthru
        _
      %p242 = scmp.le.s32.totalorder 1, %s22
      %p243 = scmp.lt.s32.totalorder %s22, 3
      %p244 = pnand %p242, %p243
      %p245 = pneg %p244
      // Predicated region
      $region29: #{tpu_custom_call.1} parent=5 // pred_check
        _
      $region30: #{tpu_custom_call.1} parent=5 // pred_check_branch
        %247 = sbr.rel (%p244) target = $region32
      $region31: #{tpu_custom_call.1} parent=5 // pred_region
        %s248 = ssub.s32 %s22, 1
        %s249 = sand.u32 %s49, 1
        %s250 = scalar_lea.sflag [#allocation3], %s249
        %s251 = sand.u32 %s49, 1
        %s252 = smul.addr %s251, 8
        %s253 = scalar_lea.vmem [#allocation2], %s252
        // Predicated region
        $region33: #{tpu_custom_call.1} parent=31 // pred_check
          %p254 = pneg %p62
        $region34: #{tpu_custom_call.1} parent=31 // pred_check_branch
          %256 = sbr.rel (%p254) target = $region36
        $region35: #{tpu_custom_call.1} parent=31 // pred_region
          %257 = dma.done %s250, 128
        $region36: #{tpu_custom_call.1} parent=31 // pred_fallthru
          _
        // Predicated region
        $region37: #{tpu_custom_call.1} parent=31 // pred_check
          %p258 = pneg %p83
        $region38: #{tpu_custom_call.1} parent=31 // pred_check_branch
          %260 = sbr.rel (%p258) target = $region40
        $region39: #{tpu_custom_call.1} parent=31 // pred_region
          %261 = dma.done [#allocation6], 1536
        $region40: #{tpu_custom_call.1} parent=31 // pred_fallthru
          _
        %s262 = sand.u32 %s49, 1
        %s263 = scalar_lea.sflag [#allocation3], %s262
        %s264 = sand.u32 %s49, 1
        %s265 = smul.addr %s264, 8
        %s266 = scalar_lea.vmem [#allocation2], %s265
        %p267 = pneg %p62
        %p268 = pneg %p59
        %p269 = pneg %p83
        %p270 = pneg %p80
        %p271 = pneg %p104
        %p272 = pneg %p101
        %p273 = pneg %p132
        %p274 = pneg %p129
        %s275 = sand.u32 %s119, 1
        %s276 = scalar_lea.sflag [#allocation4], %s275
        %s277 = sand.u32 %s119, 1
        %s278 = smul.addr %s277, 8
        %s279 = scalar_lea.vmem [#allocation7], %s278
        %p280 = pneg %p160
        %p281 = pneg %p157
        %p282 = scmp.lt.s32.totalorder %s31, 1
        %s283 = scalar_select %p282, %s31, 1
        %p284 = scmp.lt.s32.totalorder %s32, 0
        %s285 = scalar_select %p284, %s32, 0
        %s286 = smul.addr %s283, 16
        %s287 = sadd.s32 %s285, %s286
        %s288 = smul.addr %s287, 8
        %s289 = scalar_lea.vmem %s4, %s288
        %p290 = pneg %p188
        %p291 = pneg %p185
        %s292 = sand.u32 %s175, 1
        %s293 = scalar_lea.sflag [#allocation9], %s292
        %s294 = sand.u32 %s175, 1
        %s295 = smul.addr %s294, 8
        %s296 = scalar_lea.vmem [#allocation8], %s295
        %p297 = scmp.lt.s32.totalorder %s31, 1
        %s298 = scalar_select %p297, %s31, 1
        %p299 = scmp.lt.s32.totalorder %s32, 0
        %s300 = scalar_select %p299, %s32, 0
        %s301 = smul.addr %s298, 16
        %s302 = sadd.s32 %s300, %s301
        %s303 = smul.addr %s302, 8
        %s304 = scalar_lea.vmem %s4, %s303
        %v305 = vld [vmem:[%s253] sm:$0xff]
        %v306 = vld [vmem:[#allocation5] sm:$0xff]
        %v307 = vld [vmem:[#allocation5 + $0x8] sm:$0xff]
        %v308 = vld [vmem:[#allocation5 + $0x10] sm:$0xff]
        %v309 = vld [vmem:[#allocation5 + $0x18] sm:$0xff]
        %v310 = vld [vmem:[#allocation5 + $0x20] sm:$0xff]
        %v311 = vld [vmem:[#allocation5 + $0x28] sm:$0xff]
        %v312 = vld [vmem:[#allocation5 + $0x30] sm:$0xff]
        %v313 = vld [vmem:[#allocation5 + $0x38] sm:$0xff]
        %v314 = vld [vmem:[#allocation5 + $0x40] sm:$0xff]
        %v315 = vld [vmem:[#allocation5 + $0x48] sm:$0xff]
        %v316 = vld [vmem:[#allocation5 + $0x50] sm:$0xff]
        %v317 = vld [vmem:[#allocation5 + $0x58] sm:$0xff]
        %v318 = vld [vmem:[%s2] sm:$0x7]
        %v320 = vlaneseq
        %v321 = vshrl.u32 %v320, 7
        %v322 = vsub.s32 0, %v321
        %v323 = vrot.slane %v318, %v322
        %v324 = vlaneseq
        %v325 = vshrl.u32 %v324, 7
        %v326 = vsub.s32 1, %v325
        %v327 = vrot.slane %v318, %v326
        %v328 = vlaneseq
        %v329 = vshrl.u32 %v328, 7
        %v330 = vsub.s32 2, %v329
        %v331 = vrot.slane %v318, %v330
        %vm335 = vcmask 261120
        %v337 = vsel %vm335, %v305, 0
        %339 = vmatprep.subr.mxu0 %v307
        %340 = vmatpush1.msra.mxu0 %v306
        %341 = vmatprep.subr.mxu0 %v310
        %342 = vmatpush1.msra.mxu0 %v309
        %343 = vmatprep.subr.mxu0 %v313
        %344 = vmatpush1.msra.mxu0 %v312
        %345 = vmatprep.subr.mxu0 %v316
        %346 = vmatpush1.msra.mxu0 %v315
        %347 = vmatprep.subr.mxu0 0.0
        %348 = vmatpush1.msra.mxu0 0.0
        %349 = vmatprep.subr.mxu0 0.0
        %350 = vmatpush1.msra.mxu0 0.0
        %351 = vmatprep.subr.mxu0 0.0
        %352 = vmatpush1.msra.mxu0 0.0
        %353 = vmatprep.subr.mxu0 0.0
        %354 = vmatpush1.msra.mxu0 0.0
        %355 = vmatprep.subr.mxu0 0.0
        %356 = vmatpush1.msra.mxu0 0.0
        %357 = vmatprep.subr.mxu0 0.0
        %358 = vmatpush1.msra.mxu0 0.0
        %359 = vmatprep.subr.mxu0 0.0
        %360 = vmatpush1.msra.mxu0 0.0
        %361 = vmatprep.subr.mxu0 0.0
        %362 = vmatpush1.msra.mxu0 0.0
        %363 = vmatprep.subr.mxu0 0.0
        %364 = vmatpush1.msra.mxu0 0.0
        %365 = vmatprep.subr.mxu0 0.0
        %366 = vmatpush1.msra.mxu0 0.0
        %367 = vmatprep.subr.mxu0 0.0
        %368 = vmatpush1.msra.mxu0 0.0
        %369 = vmatprep.subr.mxu0 0.0
        %370 = vmatpush1.msra.mxu0 0.0
        %371 = vmatprep.subr.mxu0 0.0
        %372 = vmatpush1.msra.mxu0 0.0
        %373 = vmatprep.subr.mxu0 0.0
        %374 = vmatpush1.msra.mxu0 0.0
        %375 = vmatprep.subr.mxu0 0.0
        %376 = vmatpush1.msra.mxu0 0.0
        %377 = vmatprep.subr.mxu0 0.0
        %378 = vmatpush1.msra.mxu0 0.0
        %379 = vmatprep.subr.mxu0 0.0
        %380 = vmatpush1.msra.mxu0 0.0
        %381 = vmatprep.subr.mxu0 0.0
        %382 = vmatpush1.msra.mxu0 0.0
        %383 = vmatprep.subr.mxu0 0.0
        %384 = vmatpush1.msra.mxu0 0.0
        %385 = vmatprep.subr.mxu0 0.0
        %386 = vmatpush1.msra.mxu0 0.0
        %387 = vmatprep.subr.mxu0 0.0
        %388 = vmatpush1.msra.mxu0 0.0
        %389 = vmatprep.subr.mxu0 0.0
        %390 = vmatpush1.msra.mxu0 0.0
        %391 = vmatprep.subr.mxu0 0.0
        %392 = vmatpush1.msra.mxu0 0.0
        %393 = vmatprep.subr.mxu0 0.0
        %394 = vmatpush1.msra.mxu0 0.0
        %395 = vmatprep.subr.mxu0 0.0
        %396 = vmatpush1.msra.mxu0 0.0
        %397 = vmatprep.subr.mxu0 0.0
        %398 = vmatpush1.msra.mxu0 0.0
        %399 = vmatprep.subr.mxu0 0.0
        %400 = vmatpush1.msra.mxu0 0.0
        %401 = vmatprep.subr.mxu0 0.0
        %402 = vmatpush1.msra.mxu0 0.0
        %403 = vmatprep.mubr.f32.mxu0 0.0
        %404 = vmatmul.mubr.f32.gmra.mrb[0].mxu0 %v337
        %v405 = vpop.f32.mrb[0].mxu0
        %v406 = vadd.f32 %v323, %v405
        %v407 = vpop.f32.mrb[0].mxu0
        %v408 = vadd.f32 %v327, %v407
        %409 = vdwg.mxu0
        %410 = vmatprep.subr.mxu0 0.0
        %411 = vmatpush1.msra.mxu0 %v308
        %412 = vmatprep.subr.mxu0 0.0
        %413 = vmatpush1.msra.mxu0 %v311
        %414 = vmatprep.subr.mxu0 0.0
        %415 = vmatpush1.msra.mxu0 %v314
        %416 = vmatprep.subr.mxu0 0.0
        %417 = vmatpush1.msra.mxu0 %v317
        %418 = vmatprep.subr.mxu0 0.0
        %419 = vmatpush1.msra.mxu0 0.0
        %420 = vmatprep.subr.mxu0 0.0
        %421 = vmatpush1.msra.mxu0 0.0
        %422 = vmatprep.subr.mxu0 0.0
        %423 = vmatpush1.msra.mxu0 0.0
        %424 = vmatprep.subr.mxu0 0.0
        %425 = vmatpush1.msra.mxu0 0.0
        %426 = vmatprep.subr.mxu0 0.0
        %427 = vmatpush1.msra.mxu0 0.0
        %428 = vmatprep.subr.mxu0 0.0
        %429 = vmatpush1.msra.mxu0 0.0
        %430 = vmatprep.subr.mxu0 0.0
        %431 = vmatpush1.msra.mxu0 0.0
        %432 = vmatprep.subr.mxu0 0.0
        %433 = vmatpush1.msra.mxu0 0.0
        %434 = vmatprep.subr.mxu0 0.0
        %435 = vmatpush1.msra.mxu0 0.0
        %436 = vmatprep.subr.mxu0 0.0
        %437 = vmatpush1.msra.mxu0 0.0
        %438 = vmatprep.subr.mxu0 0.0
        %439 = vmatpush1.msra.mxu0 0.0
        %440 = vmatprep.subr.mxu0 0.0
        %441 = vmatpush1.msra.mxu0 0.0
        %442 = vmatprep.subr.mxu0 0.0
        %443 = vmatpush1.msra.mxu0 0.0
        %444 = vmatprep.subr.mxu0 0.0
        %445 = vmatpush1.msra.mxu0 0.0
        %446 = vmatprep.subr.mxu0 0.0
        %447 = vmatpush1.msra.mxu0 0.0
        %448 = vmatprep.subr.mxu0 0.0
        %449 = vmatpush1.msra.mxu0 0.0
        %450 = vmatprep.subr.mxu0 0.0
        %451 = vmatpush1.msra.mxu0 0.0
        %452 = vmatprep.subr.mxu0 0.0
        %453 = vmatpush1.msra.mxu0 0.0
        %454 = vmatprep.subr.mxu0 0.0
        %455 = vmatpush1.msra.mxu0 0.0
        %456 = vmatprep.subr.mxu0 0.0
        %457 = vmatpush1.msra.mxu0 0.0
        %458 = vmatprep.subr.mxu0 0.0
        %459 = vmatpush1.msra.mxu0 0.0
        %460 = vmatprep.subr.mxu0 0.0
        %461 = vmatpush1.msra.mxu0 0.0
        %462 = vmatprep.subr.mxu0 0.0
        %463 = vmatpush1.msra.mxu0 0.0
        %464 = vmatprep.subr.mxu0 0.0
        %465 = vmatpush1.msra.mxu0 0.0
        %466 = vmatprep.subr.mxu0 0.0
        %467 = vmatpush1.msra.mxu0 0.0
        %468 = vmatprep.subr.mxu0 0.0
        %469 = vmatpush1.msra.mxu0 0.0
        %470 = vmatprep.subr.mxu0 0.0
        %471 = vmatpush1.msra.mxu0 0.0
        %472 = vmatprep.subr.mxu0 0.0
        %473 = vmatpush1.msra.mxu0 0.0
        %474 = vmatprep.mubr.f32.mxu0 0.0
        %475 = vmatmul.mubr.f32.gmra.mrb[0].mxu0 %v337
        %v476 = vpop.f32.mrb[0].mxu0
        %v477 = vadd.f32 %v331, %v476
        %v478 = vpop.f32.mrb[0].mxu0
        %479 = vdwg.mxu0
        %480 = vst [vmem:[%s279] sm:$0xff] %v406
        %481 = vxpose.xlu0.b32.start [1/16] %v408, 128
        %482 = vxpose.xlu0.b32.cont [2/16] 0.0, 128
        %483 = vxpose.xlu0.b32.cont [3/16] 0.0, 128
        %484 = vxpose.xlu0.b32.cont [4/16] 0.0, 128
        %485 = vxpose.xlu0.b32.cont [5/16] 0.0, 128
        %486 = vxpose.xlu0.b32.cont [6/16] 0.0, 128
        %487 = vxpose.xlu0.b32.cont [7/16] 0.0, 128
        %488 = vxpose.xlu0.b32.cont [8/16] 0.0, 128
        %489 = vxpose.xlu0.b32.cont [9/16] 0.0, 128
        %490 = vxpose.xlu0.b32.cont [10/16] 0.0, 128
        %491 = vxpose.xlu0.b32.cont [11/16] 0.0, 128
        %492 = vxpose.xlu0.b32.cont [12/16] 0.0, 128
        %493 = vxpose.xlu0.b32.cont [13/16] 0.0, 128
        %494 = vxpose.xlu0.b32.cont [14/16] 0.0, 128
        %495 = vxpose.xlu0.b32.cont [15/16] 0.0, 128
        %496 = vxpose.xlu0.b32.end [16/16] 0.0, 128
        %v497 = vpop.trf.xlu0
        %v498 = vpop.trf.xlu0
        %v499 = vpop.trf.xlu0
        %v500 = vpop.trf.xlu0
        %v501 = vpop.trf.xlu0
        %v502 = vpop.trf.xlu0
        %v503 = vpop.trf.xlu0
        %v504 = vpop.trf.xlu0
        %v505 = vpop.trf.xlu0
        %v506 = vpop.trf.xlu0
        %v507 = vpop.trf.xlu0
        %v508 = vpop.trf.xlu0
        %v509 = vpop.trf.xlu0
        %v510 = vpop.trf.xlu0
        %v511 = vpop.trf.xlu0
        %v512 = vpop.trf.xlu0
        %vm513 = vcmask 64512
        %514 = vst.msk [vmem:[%s304] sm:$0xff] %vm513, %v497
        %515 = vst.msk [vmem:[%s304 + $0x8] sm:$0xff] %vm513, %v498
        %516 = vst.msk [vmem:[%s304 + $0x10] sm:$0xff] %vm513, %v499
        %517 = vst.msk [vmem:[%s304 + $0x18] sm:$0xff] %vm513, %v500
        %518 = vst.msk [vmem:[%s304 + $0x20] sm:$0xff] %vm513, %v501
        %519 = vst.msk [vmem:[%s304 + $0x28] sm:$0xff] %vm513, %v502
        %520 = vst.msk [vmem:[%s304 + $0x30] sm:$0xff] %vm513, %v503
        %521 = vst.msk [vmem:[%s304 + $0x38] sm:$0xff] %vm513, %v504
        %522 = vst.msk [vmem:[%s304 + $0x40] sm:$0xff] %vm513, %v505
        %523 = vst.msk [vmem:[%s304 + $0x48] sm:$0xff] %vm513, %v506
        %524 = vst.msk [vmem:[%s304 + $0x50] sm:$0xff] %vm513, %v507
        %525 = vst.msk [vmem:[%s304 + $0x58] sm:$0xff] %vm513, %v508
        %526 = vst.msk [vmem:[%s304 + $0x60] sm:$0xff] %vm513, %v509
        %527 = vst.msk [vmem:[%s304 + $0x68] sm:$0xff] %vm513, %v510
        %528 = vst.msk [vmem:[%s304 + $0x70] sm:$0xff] %vm513, %v511
        %529 = vst.msk [vmem:[%s304 + $0x78] sm:$0xff] %vm513, %v512
        %530 = vst.msk [vmem:[%s296] sm:$0xff] %vm335, %v477
        %s531 = sand.u32 %s119, 1
        %s532 = scalar_lea.sflag [#allocation4], %s531
        %s533 = sand.u32 %s119, 1
        %s534 = smul.addr %s533, 8
        %s535 = scalar_lea.vmem [#allocation7], %s534
        %p536 = scmp.lt.s32.totalorder %s31, 1
        %s537 = scalar_select %p536, %s31, 1
        %p538 = scmp.lt.s32.totalorder %s32, 0
        %s539 = scalar_select %p538, %s32, 0
        %s540 = smul.addr %s537, 16
        %s541 = sadd.s32 %s539, %s540
        %s542 = smul.addr %s541, 8
        %s543 = scalar_lea.vmem %s4, %s542
        %s544 = sand.u32 %s175, 1
        %s545 = scalar_lea.sflag [#allocation9], %s544
        %s546 = sand.u32 %s175, 1
        %s547 = smul.addr %s546, 8
        %s548 = scalar_lea.vmem [#allocation8], %s547
        // Predicated region
        $region41: #{tpu_custom_call.1} parent=31 // pred_check
          %p549 = pneg %p129
        $region42: #{tpu_custom_call.1} parent=31 // pred_check_branch
          %551 = sbr.rel (%p549) target = $region44
        $region43: #{tpu_custom_call.1} parent=31 // pred_region
          %s553 = ssub.s32 128, 128
          %554 = vsyncadd %s532, %s553
          %s555 = sadd.s32 %s32, %s31
          %s556 = smul.addr %s555, 128
          %s557 = scalar_lea.hbm %s3, %s556
          %s559 = sshll.u32 %s535, 4
          %s560 = int_to_ptr.vmem [resolvable:$true] %s559
          %562 = dma.vmem_to_hbm [thread:$0]  %s560, 128, %s557, %s532
        $region44: #{tpu_custom_call.1} parent=31 // pred_fallthru
          _
        // Predicated region
        $region45: #{tpu_custom_call.1} parent=31 // pred_check
          %p563 = pneg %p157
        $region46: #{tpu_custom_call.1} parent=31 // pred_check_branch
          %565 = sbr.rel (%p563) target = $region48
        $region47: #{tpu_custom_call.1} parent=31 // pred_region
          _
        $region48: #{tpu_custom_call.1} parent=31 // pred_fallthru
          _
        // Predicated region
        $region49: #{tpu_custom_call.1} parent=31 // pred_check
          %p566 = pneg %p185
        $region50: #{tpu_custom_call.1} parent=31 // pred_check_branch
          %568 = sbr.rel (%p566) target = $region52
        $region51: #{tpu_custom_call.1} parent=31 // pred_region
          %s570 = ssub.s32 128, 128
          %571 = vsyncadd %s545, %s570
          %s572 = sadd.s32 %s32, %s31
          %s573 = smul.addr %s572, 128
          %s574 = scalar_lea.hbm %s5, %s573
          %s576 = sshll.u32 %s548, 4
          %s577 = int_to_ptr.vmem [resolvable:$true] %s576
          %579 = dma.vmem_to_hbm [thread:$0]  %s577, 128, %s574, %s545
        $region52: #{tpu_custom_call.1} parent=31 // pred_fallthru
          _
      $region32: #{tpu_custom_call.1} parent=5 // pred_fallthru
        _
      %p580 = scmp.le.s32.totalorder 2, %s22
      // Predicated region
      $region53: #{tpu_custom_call.1} parent=5 // pred_check
        %p581 = pneg %p580
      $region54: #{tpu_custom_call.1} parent=5 // pred_check_branch
        %583 = sbr.rel (%p581) target = $region56
      $region55: #{tpu_custom_call.1} parent=5 // pred_region
        %s584 = ssub.s32 %s22, 2
        // Predicated region
        $region57: #{tpu_custom_call.1} parent=55 // pred_check
          %p585 = pneg %p135
        $region58: #{tpu_custom_call.1} parent=55 // pred_check_branch
          %587 = sbr.rel (%p585) target = $region60
        $region59: #{tpu_custom_call.1} parent=55 // pred_region
          %s588 = sand.u32 %s120, 1
          %s589 = scalar_lea.sflag [#allocation4], %s588
          %s590 = sand.u32 %s120, 1
          %s591 = smul.addr %s590, 8
          %s592 = scalar_lea.vmem [#allocation7], %s591
          %593 = dma.done %s589, 128
        $region60: #{tpu_custom_call.1} parent=55 // pred_fallthru
          _
        // Predicated region
        $region61: #{tpu_custom_call.1} parent=55 // pred_check
          %p594 = pneg %p163
        $region62: #{tpu_custom_call.1} parent=55 // pred_check_branch
          %596 = sbr.rel (%p594) target = $region64
        $region63: #{tpu_custom_call.1} parent=55 // pred_region
          %p597 = scmp.lt.s32.totalorder %s33, 1
          %s598 = scalar_select %p597, %s33, 1
          %p599 = scmp.lt.s32.totalorder %s34, 0
          %s600 = scalar_select %p599, %s34, 0
          %s601 = smul.addr %s598, 16
          %s602 = sadd.s32 %s600, %s601
          %s603 = smul.addr %s602, 8
          %s604 = scalar_lea.vmem %s4, %s603
        $region64: #{tpu_custom_call.1} parent=55 // pred_fallthru
          _
        // Predicated region
        $region65: #{tpu_custom_call.1} parent=55 // pred_check
          %p605 = pneg %p191
        $region66: #{tpu_custom_call.1} parent=55 // pred_check_branch
          %607 = sbr.rel (%p605) target = $region68
        $region67: #{tpu_custom_call.1} parent=55 // pred_region
          %s608 = sand.u32 %s176, 1
          %s609 = scalar_lea.sflag [#allocation9], %s608
          %s610 = sand.u32 %s176, 1
          %s611 = smul.addr %s610, 8
          %s612 = scalar_lea.vmem [#allocation8], %s611
          %613 = dma.done %s609, 128
        $region68: #{tpu_custom_call.1} parent=55 // pred_fallthru
          _
      $region56: #{tpu_custom_call.1} parent=5 // pred_fallthru
        _
    $region6: #{tpu_custom_call.1} parent=1 // loop_footer
      %s26 = sadd.s32 1, %s22
    $region7: #{tpu_custom_call.1} parent=1 // loop_footer_branch
      %21 = sbr.rel target = $region3
    $region8: #{tpu_custom_call.1} parent=1 // loop_exit
      _
    %614 = vsyncpa [#allocation3], 1
    %s615 = scalar_lea.sflag [#allocation3], 1
    %616 = vsyncpa %s615, 1
    %617 = vsyncpa [#allocation6], 1
    %618 = vsyncpa [#allocation4], 1
    %s619 = scalar_lea.sflag [#allocation4], 1
    %620 = vsyncpa %s619, 1
    %621 = vsyncpa [#allocation9], 1
    %s622 = scalar_lea.sflag [#allocation9], 1
    %623 = vsyncpa %s622, 1

</llo_original>
